<compile_context>
chip_gen: v6e
topology: v6e:2x2x1
jax: 0.10.0
libtpu: 0.0.40
codegen_flags: <defaults>
</compile_context>

<pallas_src>
import functools
import math

import jax
import jax.numpy as jnp
from jax import lax
from jax.experimental import pallas as pl
from jax.experimental.pallas import tpu as pltpu


def _cdiv(a, b):
    return (a + b - 1) // b


def _round_up(x, m):
    return ((x + m - 1) // m) * m


def _ce_sum_kernel(x_ref, t_ref, out_ref, acc_ref, *,
                   c, r, s_steps, hw, needs_mask, pick_dtype, unroll):
    """One (batch, spatial-shard, spatial-step) grid point.

    x_ref : (c, r, 128)  pred slab (native dtype), spatial on lanes
    t_ref : (r, 128)     integer class ids
    out_ref: (1, 128)    per-lane loss partials for this (batch, shard)
    acc_ref: (r, 128) f32 accumulator, resident across the reduction axis
    """
    si = pl.program_id(2)

    @pl.when(si == 0)
    def _init():
        acc_ref[...] = jnp.zeros_like(acc_ref)

    t = t_ref[...].astype(jnp.int32)                       # (r, 128)

    # ---- pass 1 (fused): running max over classes + target-logit pick. ----
    # Scalar class-id compare against t; no (C, r, 128) iota / select temps.
    def pass1(ci, carry):
        mx, picked = carry
        xc = x_ref[ci].astype(pick_dtype)                  # (r, 128)
        return jnp.maximum(mx, xc), jnp.where(t == ci, xc, picked)

    mx, picked = lax.fori_loop(
        0, c, pass1,
        (jnp.full((r, 128), -jnp.inf, pick_dtype),
         jnp.zeros((r, 128), pick_dtype)),
        unroll=unroll)
    mx_f32 = mx.astype(jnp.float32)

    # ---- pass 2: sum(exp(x - max)) in f32 (two-pass; no online rescale). ----
    def pass2(ci, s):
        return s + jnp.exp(x_ref[ci].astype(jnp.float32) - mx_f32)

    sexp = lax.fori_loop(0, c, pass2,
                         jnp.zeros((r, 128), jnp.float32), unroll=unroll)

    loss = jnp.log(sexp) + mx_f32 - picked.astype(jnp.float32)   # (r, 128)

    if needs_mask:
        # Mask by absolute spatial index (valid iff < hw): garbage from
        # partially-out-of-range blocks / spatial padding contributes 0,
        # so pred never needs an HBM pad copy when hw % 128 == 0.
        pi = pl.program_id(1)
        start = (pi * s_steps + si) * (r * 128)
        row = lax.broadcasted_iota(jnp.int32, (r, 128), 0)
        col = lax.broadcasted_iota(jnp.int32, (r, 128), 1)
        loss = jnp.where(start + row * 128 + col < hw, loss, 0.0)

    acc_ref[...] += loss

    @pl.when(si == pl.num_programs(2) - 1)
    def _finalize():
        out_ref[...] = jnp.sum(acc_ref[...], axis=0, keepdims=True)


def ce_loss_pallas(pred, target, *, block_bytes=4 << 20):
    """pred: (N, C, *spatial) float; target: (N, *spatial) integer class ids.

    Returns sum over all positions of -log_softmax(pred, 1)[target] / N.
    """
    n, c = pred.shape[0], pred.shape[1]
    hw = int(math.prod(pred.shape[2:]))
    x_dt = jnp.dtype(pred.dtype)
    itemsize = x_dt.itemsize

    # Keep int32 targets at native width (no wrapper round-trip); cast others.
    # TODO(synk): DMA int16/int8 targets at native width and upcast in-kernel.
    t_dt = jnp.dtype(target.dtype)
    if t_dt != jnp.dtype(jnp.int32):
        target = target.astype(jnp.int32)
        t_dt = jnp.dtype(jnp.int32)

    x = pred.reshape(n, c, hw)            # free view; pred stays in NCHW order
    t = target.reshape(n, hw)

    hw128 = _round_up(hw, 128)
    if hw128 != hw:
        # Rare path (spatial size not a multiple of 128): pad so the lane
        # reshape below is legal.  TODO(synk): avoid this pred copy by taking
        # flat (1, c, r*128) blocks and re-tiling inside the kernel.
        x = jnp.pad(x, ((0, 0), (0, 0), (0, hw128 - hw)))
        t = jnp.pad(t, ((0, 0), (0, hw128 - hw)))
    lc = hw128 // 128
    x = x.reshape(n, c, lc, 128)          # spatial on lanes, classes leading
    t = t.reshape(n, lc, 128)

    # ---- tiling: r (sublane) slabs of 128 spatial elems per grid step ------
    sub = max(8, 32 // itemsize)                      # sublane packing (bf16->16)
    slab_bytes = c * 128 * itemsize
    r_target = max(sub, block_bytes // slab_bytes)
    if lc <= r_target:
        r, s_total = lc, 1
    else:
        s_total0 = _cdiv(lc, r_target)
        r = _round_up(_cdiv(lc, s_total0), sub)       # fit-to-lc: overshoot < sub
        s_total = _cdiv(lc, r)
    # 2-way spatial shard only when it divides evenly (both v7x cores get work
    # even at batch 1; a harmless extra grid dim on single-core chips).
    p = 2 if (s_total >= 2 and s_total % 2 == 0) else 1
    s_steps = s_total // p

    coverage = p * s_steps * r * 128                  # spatial elems DMA'd / batch
    needs_mask = coverage != hw
    # TODO(synk): for vocab-scale C (>= a few thousand) add a C-reduction grid
    # axis with a carried max in scratch so blocks stay in VMEM and per-class
    # DMA segments stay >= 32 KiB.

    pick_dtype = jnp.bfloat16 if x_dt == jnp.dtype(jnp.bfloat16) else jnp.float32
    unroll = int(min(c, 8))

    kernel = functools.partial(
        _ce_sum_kernel, c=c, r=r, s_steps=s_steps, hw=hw,
        needs_mask=needs_mask, pick_dtype=pick_dtype, unroll=unroll)

    x_block_bytes = c * r * 128 * itemsize
    t_block_bytes = r * 128 * t_dt.itemsize
    vmem_need = 2 * (x_block_bytes + t_block_bytes) + 10 * r * 128 * 4
    vmem_limit = int(min(48 << 20, max(32 << 20, 2 * vmem_need)))

    cost = pl.CostEstimate(
        flops=6 * n * coverage * c,
        transcendentals=n * coverage * (c + 1),
        bytes_accessed=n * coverage * (c * itemsize + t_dt.itemsize)
        + n * p * 128 * 4,
    )

    partials = pl.pallas_call(
        kernel,
        out_shape=jax.ShapeDtypeStruct((n, p, 1, 128), jnp.float32),
        grid_spec=pltpu.PrefetchScalarGridSpec(
            num_scalar_prefetch=0,
            grid=(n, p, s_steps),
            in_specs=[
                pl.BlockSpec((None, c, r, 128),
                             lambda ni, pi, si: (ni, 0, pi * s_steps + si, 0)),
                pl.BlockSpec((None, r, 128),
                             lambda ni, pi, si: (ni, pi * s_steps + si, 0)),
            ],
            out_specs=pl.BlockSpec((None, None, 1, 128),
                                   lambda ni, pi, si: (ni, pi, 0, 0)),
            scratch_shapes=[pltpu.VMEM((r, 128), jnp.float32)],
        ),
        compiler_params=pltpu.CompilerParams(
            dimension_semantics=("parallel", "parallel", "arbitrary"),
            vmem_limit_bytes=vmem_limit,
        ),
        cost_estimate=cost,
    )(x, t)

    # reduction='sum' divided by len(pred) == batch size N (plain JAX glue).
    return jnp.sum(partials) / n


def ce_loss_ref(pred, target):
    """Pure-JAX reference matching the PyTorch module."""
    n, c = pred.shape[0], pred.shape[1]
    logp = jax.nn.log_softmax(pred.astype(jnp.float32), axis=1)
    logp = jnp.moveaxis(logp, 1, -1).reshape(-1, c)
    t = target.reshape(-1).astype(jnp.int32)
    picked = jnp.take_along_axis(logp, t[:, None], axis=-1)[:, 0]
    return -jnp.sum(picked) / n


if __name__ == "__main__":
    key = jax.random.PRNGKey(0)
    k1, k2, k3, k4 = jax.random.split(key, 4)

    # Case 1: spatial size is a multiple of 128 (no pad, no mask path).
    N, C, H, W = 2, 8, 16, 16
    pred = jax.random.normal(k1, (N, C, H, W), dtype=jnp.float32)
    target = jax.random.randint(k2, (N, H, W), 0, C, dtype=jnp.int32)
    loss = jax.block_until_ready(ce_loss_pallas(pred, target))
    ref = jax.block_until_ready(ce_loss_ref(pred, target))
    assert jnp.allclose(loss, ref, rtol=1e-5, atol=1e-5), (loss, ref)

    # Case 2: ragged spatial size (exercises the in-kernel spatial mask).
    N2, C2, H2, W2 = 2, 5, 3, 7
    pred2 = jax.random.normal(k3, (N2, C2, H2, W2), dtype=jnp.float32)
    target2 = jax.random.randint(k4, (N2, H2, W2), 0, C2, dtype=jnp.int32)
    loss2 = jax.block_until_ready(ce_loss_pallas(pred2, target2))
    ref2 = jax.block_until_ready(ce_loss_ref(pred2, target2))
    assert jnp.allclose(loss2, ref2, rtol=1e-5, atol=1e-5), (loss2, ref2)

    print("KERNEL_OK")
</pallas_src>

<mosaic_0001>
module attributes {stable_mosaic.version = 11 : i64} {
  func.func @_ce_sum_kernel(%arg0: i32, %arg1: i32, %arg2: i32, %arg3: memref<1x8x2x128xf32, #tpu.memory_space<vmem>>, %arg4: memref<1x2x128xi32, #tpu.memory_space<vmem>>, %arg5: memref<1x1x1x128xf32, #tpu.memory_space<vmem>>, %arg6: memref<2x128xf32, #tpu.memory_space<vmem>>) attributes {dimension_semantics = [#tpu.dimension_semantics<parallel>, #tpu.dimension_semantics<parallel>, #tpu.dimension_semantics<arbitrary>], iteration_bounds = array<i64: 2, 1, 1>, scalar_prefetch = 0 : i64, scratch_operands = 1 : i64, tpu.core_type = #tpu.core_type<tc>, window_params = [{transform_indices = @transform_0, window_bounds = array<i64: 1, 8, 2, 128>}, {transform_indices = @transform_1, window_bounds = array<i64: 1, 2, 128>}, {transform_indices = @transform_2, window_bounds = array<i64: 1, 1, 1, 128>}]} {
    %c0_i32 = arith.constant 0 : i32
    %0 = arith.cmpi eq, %arg2, %c0_i32 : i32
    %1 = arith.extui %0 : i1 to i32
    %c0_i32_0 = arith.constant 0 : i32
    %2 = arith.cmpi ne, %1, %c0_i32_0 : i32
    scf.if %2 {
      %cst_69 = arith.constant 0.000000e+00 : f32
      %121 = vector.broadcast %cst_69 : f32 to vector<2x128xf32>
      %c0_70 = arith.constant 0 : index
      %c0_71 = arith.constant 0 : index
      %122 = vector.load %arg6[%c0_70, %c0_71] : memref<2x128xf32, #tpu.memory_space<vmem>>, vector<2x128xf32>
      tpu.vector_store %arg6[%c0_70, %c0_71], %121 {strides = array<i32>} : memref<2x128xf32, #tpu.memory_space<vmem>>, vector<2x128xf32>,
    } else {
    }
    %c0 = arith.constant 0 : index
    %c0_1 = arith.constant 0 : index
    %c0_2 = arith.constant 0 : index
    %3 = vector.load %arg4[%c0, %c0_1, %c0_2] : memref<1x2x128xi32, #tpu.memory_space<vmem>>, vector<1x2x128xi32>
    %4 = vector.shape_cast %3 : vector<1x2x128xi32> to vector<2x128xi32>
    %cst = arith.constant 0xFF800000 : f32
    %5 = vector.broadcast %cst : f32 to vector<2x128xf32>
    %cst_3 = arith.constant 0.000000e+00 : f32
    %6 = vector.broadcast %cst_3 : f32 to vector<2x128xf32>
    %c0_i32_4 = arith.constant 0 : i32
    %c0_5 = arith.constant 0 : index
    %7 = arith.index_cast %c0_i32_4 : i32 to index
    %c0_6 = arith.constant 0 : index
    %c0_7 = arith.constant 0 : index
    %8 = vector.load %arg3[%c0_5, %7, %c0_6, %c0_7] : memref<1x8x2x128xf32, #tpu.memory_space<vmem>>, vector<1x1x2x128xf32>
    %9 = vector.shape_cast %8 : vector<1x1x2x128xf32> to vector<2x128xf32>
    %10 = arith.maximumf %5, %9 : vector<2x128xf32>
    %11 = vector.broadcast %c0_i32_4 : i32 to vector<2x128xi32>
    %12 = arith.cmpi eq, %4, %11 : vector<2x128xi32>
    %13 = arith.select %12, %9, %6 : vector<2x128xi1>, vector<2x128xf32>
    %c1_i32 = arith.constant 1 : i32
    %c0_8 = arith.constant 0 : index
    %14 = arith.index_cast %c1_i32 : i32 to index
    %c0_9 = arith.constant 0 : index
    %c0_10 = arith.constant 0 : index
    %15 = vector.load %arg3[%c0_8, %14, %c0_9, %c0_10] : memref<1x8x2x128xf32, #tpu.memory_space<vmem>>, vector<1x1x2x128xf32>
    %16 = vector.shape_cast %15 : vector<1x1x2x128xf32> to vector<2x128xf32>
    %17 = arith.maximumf %10, %16 : vector<2x128xf32>
    %18 = vector.broadcast %c1_i32 : i32 to vector<2x128xi32>
    %19 = arith.cmpi eq, %4, %18 : vector<2x128xi32>
    %20 = arith.select %19, %16, %13 : vector<2x128xi1>, vector<2x128xf32>
    %c2_i32 = arith.constant 2 : i32
    %c0_11 = arith.constant 0 : index
    %21 = arith.index_cast %c2_i32 : i32 to index
    %c0_12 = arith.constant 0 : index
    %c0_13 = arith.constant 0 : index
    %22 = vector.load %arg3[%c0_11, %21, %c0_12, %c0_13] : memref<1x8x2x128xf32, #tpu.memory_space<vmem>>, vector<1x1x2x128xf32>
    %23 = vector.shape_cast %22 : vector<1x1x2x128xf32> to vector<2x128xf32>
    %24 = arith.maximumf %17, %23 : vector<2x128xf32>
    %25 = vector.broadcast %c2_i32 : i32 to vector<2x128xi32>
    %26 = arith.cmpi eq, %4, %25 : vector<2x128xi32>
    %27 = arith.select %26, %23, %20 : vector<2x128xi1>, vector<2x128xf32>
    %c3_i32 = arith.constant 3 : i32
    %c0_14 = arith.constant 0 : index
    %28 = arith.index_cast %c3_i32 : i32 to index
    %c0_15 = arith.constant 0 : index
    %c0_16 = arith.constant 0 : index
    %29 = vector.load %arg3[%c0_14, %28, %c0_15, %c0_16] : memref<1x8x2x128xf32, #tpu.memory_space<vmem>>, vector<1x1x2x128xf32>
    %30 = vector.shape_cast %29 : vector<1x1x2x128xf32> to vector<2x128xf32>
    %31 = arith.maximumf %24, %30 : vector<2x128xf32>
    %32 = vector.broadcast %c3_i32 : i32 to vector<2x128xi32>
    %33 = arith.cmpi eq, %4, %32 : vector<2x128xi32>
    %34 = arith.select %33, %30, %27 : vector<2x128xi1>, vector<2x128xf32>
    %c4_i32 = arith.constant 4 : i32
    %c0_17 = arith.constant 0 : index
    %35 = arith.index_cast %c4_i32 : i32 to index
    %c0_18 = arith.constant 0 : index
    %c0_19 = arith.constant 0 : index
    %36 = vector.load %arg3[%c0_17, %35, %c0_18, %c0_19] : memref<1x8x2x128xf32, #tpu.memory_space<vmem>>, vector<1x1x2x128xf32>
    %37 = vector.shape_cast %36 : vector<1x1x2x128xf32> to vector<2x128xf32>
    %38 = arith.maximumf %31, %37 : vector<2x128xf32>
    %39 = vector.broadcast %c4_i32 : i32 to vector<2x128xi32>
    %40 = arith.cmpi eq, %4, %39 : vector<2x128xi32>
    %41 = arith.select %40, %37, %34 : vector<2x128xi1>, vector<2x128xf32>
    %c5_i32 = arith.constant 5 : i32
    %c0_20 = arith.constant 0 : index
    %42 = arith.index_cast %c5_i32 : i32 to index
    %c0_21 = arith.constant 0 : index
    %c0_22 = arith.constant 0 : index
    %43 = vector.load %arg3[%c0_20, %42, %c0_21, %c0_22] : memref<1x8x2x128xf32, #tpu.memory_space<vmem>>, vector<1x1x2x128xf32>
    %44 = vector.shape_cast %43 : vector<1x1x2x128xf32> to vector<2x128xf32>
    %45 = arith.maximumf %38, %44 : vector<2x128xf32>
    %46 = vector.broadcast %c5_i32 : i32 to vector<2x128xi32>
    %47 = arith.cmpi eq, %4, %46 : vector<2x128xi32>
    %48 = arith.select %47, %44, %41 : vector<2x128xi1>, vector<2x128xf32>
    %c6_i32 = arith.constant 6 : i32
    %c0_23 = arith.constant 0 : index
    %49 = arith.index_cast %c6_i32 : i32 to index
    %c0_24 = arith.constant 0 : index
    %c0_25 = arith.constant 0 : index
    %50 = vector.load %arg3[%c0_23, %49, %c0_24, %c0_25] : memref<1x8x2x128xf32, #tpu.memory_space<vmem>>, vector<1x1x2x128xf32>
    %51 = vector.shape_cast %50 : vector<1x1x2x128xf32> to vector<2x128xf32>
    %52 = arith.maximumf %45, %51 : vector<2x128xf32>
    %53 = vector.broadcast %c6_i32 : i32 to vector<2x128xi32>
    %54 = arith.cmpi eq, %4, %53 : vector<2x128xi32>
    %55 = arith.select %54, %51, %48 : vector<2x128xi1>, vector<2x128xf32>
    %c7_i32 = arith.constant 7 : i32
    %c0_26 = arith.constant 0 : index
    %56 = arith.index_cast %c7_i32 : i32 to index
    %c0_27 = arith.constant 0 : index
    %c0_28 = arith.constant 0 : index
    %57 = vector.load %arg3[%c0_26, %56, %c0_27, %c0_28] : memref<1x8x2x128xf32, #tpu.memory_space<vmem>>, vector<1x1x2x128xf32>
    %58 = vector.shape_cast %57 : vector<1x1x2x128xf32> to vector<2x128xf32>
    %59 = arith.maximumf %52, %58 : vector<2x128xf32>
    %60 = vector.broadcast %c7_i32 : i32 to vector<2x128xi32>
    %61 = arith.cmpi eq, %4, %60 : vector<2x128xi32>
    %62 = arith.select %61, %58, %55 : vector<2x128xi1>, vector<2x128xf32>
    %c8_i32 = arith.constant 8 : i32
    %cst_29 = arith.constant 0.000000e+00 : f32
    %63 = vector.broadcast %cst_29 : f32 to vector<2x128xf32>
    %c0_i32_30 = arith.constant 0 : i32
    %c0_31 = arith.constant 0 : index
    %64 = arith.index_cast %c0_i32_30 : i32 to index
    %c0_32 = arith.constant 0 : index
    %c0_33 = arith.constant 0 : index
    %65 = vector.load %arg3[%c0_31, %64, %c0_32, %c0_33] : memref<1x8x2x128xf32, #tpu.memory_space<vmem>>, vector<1x1x2x128xf32>
    %66 = vector.shape_cast %65 : vector<1x1x2x128xf32> to vector<2x128xf32>
    %67 = arith.subf %66, %59 : vector<2x128xf32>
    %68 = math.exp %67 : vector<2x128xf32>
    %69 = arith.addf %63, %68 : vector<2x128xf32>
    %c1_i32_34 = arith.constant 1 : i32
    %c0_35 = arith.constant 0 : index
    %70 = arith.index_cast %c1_i32_34 : i32 to index
    %c0_36 = arith.constant 0 : index
    %c0_37 = arith.constant 0 : index
    %71 = vector.load %arg3[%c0_35, %70, %c0_36, %c0_37] : memref<1x8x2x128xf32, #tpu.memory_space<vmem>>, vector<1x1x2x128xf32>
    %72 = vector.shape_cast %71 : vector<1x1x2x128xf32> to vector<2x128xf32>
    %73 = arith.subf %72, %59 : vector<2x128xf32>
    %74 = math.exp %73 : vector<2x128xf32>
    %75 = arith.addf %69, %74 : vector<2x128xf32>
    %c2_i32_38 = arith.constant 2 : i32
    %c0_39 = arith.constant 0 : index
    %76 = arith.index_cast %c2_i32_38 : i32 to index
    %c0_40 = arith.constant 0 : index
    %c0_41 = arith.constant 0 : index
    %77 = vector.load %arg3[%c0_39, %76, %c0_40, %c0_41] : memref<1x8x2x128xf32, #tpu.memory_space<vmem>>, vector<1x1x2x128xf32>
    %78 = vector.shape_cast %77 : vector<1x1x2x128xf32> to vector<2x128xf32>
    %79 = arith.subf %78, %59 : vector<2x128xf32>
    %80 = math.exp %79 : vector<2x128xf32>
    %81 = arith.addf %75, %80 : vector<2x128xf32>
    %c3_i32_42 = arith.constant 3 : i32
    %c0_43 = arith.constant 0 : index
    %82 = arith.index_cast %c3_i32_42 : i32 to index
    %c0_44 = arith.constant 0 : index
    %c0_45 = arith.constant 0 : index
    %83 = vector.load %arg3[%c0_43, %82, %c0_44, %c0_45] : memref<1x8x2x128xf32, #tpu.memory_space<vmem>>, vector<1x1x2x128xf32>
    %84 = vector.shape_cast %83 : vector<1x1x2x128xf32> to vector<2x128xf32>
    %85 = arith.subf %84, %59 : vector<2x128xf32>
    %86 = math.exp %85 : vector<2x128xf32>
    %87 = arith.addf %81, %86 : vector<2x128xf32>
    %c4_i32_46 = arith.constant 4 : i32
    %c0_47 = arith.constant 0 : index
    %88 = arith.index_cast %c4_i32_46 : i32 to index
    %c0_48 = arith.constant 0 : index
    %c0_49 = arith.constant 0 : index
    %89 = vector.load %arg3[%c0_47, %88, %c0_48, %c0_49] : memref<1x8x2x128xf32, #tpu.memory_space<vmem>>, vector<1x1x2x128xf32>
    %90 = vector.shape_cast %89 : vector<1x1x2x128xf32> to vector<2x128xf32>
    %91 = arith.subf %90, %59 : vector<2x128xf32>
    %92 = math.exp %91 : vector<2x128xf32>
    %93 = arith.addf %87, %92 : vector<2x128xf32>
    %c5_i32_50 = arith.constant 5 : i32
    %c0_51 = arith.constant 0 : index
    %94 = arith.index_cast %c5_i32_50 : i32 to index
    %c0_52 = arith.constant 0 : index
    %c0_53 = arith.constant 0 : index
    %95 = vector.load %arg3[%c0_51, %94, %c0_52, %c0_53] : memref<1x8x2x128xf32, #tpu.memory_space<vmem>>, vector<1x1x2x128xf32>
    %96 = vector.shape_cast %95 : vector<1x1x2x128xf32> to vector<2x128xf32>
    %97 = arith.subf %96, %59 : vector<2x128xf32>
    %98 = math.exp %97 : vector<2x128xf32>
    %99 = arith.addf %93, %98 : vector<2x128xf32>
    %c6_i32_54 = arith.constant 6 : i32
    %c0_55 = arith.constant 0 : index
    %100 = arith.index_cast %c6_i32_54 : i32 to index
    %c0_56 = arith.constant 0 : index
    %c0_57 = arith.constant 0 : index
    %101 = vector.load %arg3[%c0_55, %100, %c0_56, %c0_57] : memref<1x8x2x128xf32, #tpu.memory_space<vmem>>, vector<1x1x2x128xf32>
    %102 = vector.shape_cast %101 : vector<1x1x2x128xf32> to vector<2x128xf32>
    %103 = arith.subf %102, %59 : vector<2x128xf32>
    %104 = math.exp %103 : vector<2x128xf32>
    %105 = arith.addf %99, %104 : vector<2x128xf32>
    %c7_i32_58 = arith.constant 7 : i32
    %c0_59 = arith.constant 0 : index
    %106 = arith.index_cast %c7_i32_58 : i32 to index
    %c0_60 = arith.constant 0 : index
    %c0_61 = arith.constant 0 : index
    %107 = vector.load %arg3[%c0_59, %106, %c0_60, %c0_61] : memref<1x8x2x128xf32, #tpu.memory_space<vmem>>, vector<1x1x2x128xf32>
    %108 = vector.shape_cast %107 : vector<1x1x2x128xf32> to vector<2x128xf32>
    %109 = arith.subf %108, %59 : vector<2x128xf32>
    %110 = math.exp %109 : vector<2x128xf32>
    %111 = arith.addf %105, %110 : vector<2x128xf32>
    %c8_i32_62 = arith.constant 8 : i32
    %112 = math.log %111 : vector<2x128xf32>
    %113 = arith.addf %112, %59 : vector<2x128xf32>
    %114 = arith.subf %113, %62 : vector<2x128xf32>
    %c0_63 = arith.constant 0 : index
    %c0_64 = arith.constant 0 : index
    %115 = vector.load %arg6[%c0_63, %c0_64] : memref<2x128xf32, #tpu.memory_space<vmem>>, vector<2x128xf32>
    %116 = arith.addf %115, %114 : vector<2x128xf32>
    %c0_65 = arith.constant 0 : index
    %c0_66 = arith.constant 0 : index
    %117 = vector.load %arg6[%c0_65, %c0_66] : memref<2x128xf32, #tpu.memory_space<vmem>>, vector<2x128xf32>
    tpu.vector_store %arg6[%c0_65, %c0_66], %116 {strides = array<i32>} : memref<2x128xf32, #tpu.memory_space<vmem>>, vector<2x128xf32>,
    %c0_i32_67 = arith.constant 0 : i32
    %118 = arith.cmpi eq, %arg2, %c0_i32_67 : i32
    %119 = arith.extui %118 : i1 to i32
    %c0_i32_68 = arith.constant 0 : i32
    %120 = arith.cmpi ne, %119, %c0_i32_68 : i32
    scf.if %120 {
      %c0_69 = arith.constant 0 : index
      %c0_70 = arith.constant 0 : index
      %121 = vector.load %arg6[%c0_69, %c0_70] : memref<2x128xf32, #tpu.memory_space<vmem>>, vector<2x128xf32>
      %cst_71 = arith.constant dense<0.000000e+00> : vector<128xf32>
      %122 = vector.multi_reduction <add>, %121, %cst_71 [0] : vector<2x128xf32> to vector<128xf32>
      %123 = vector.shape_cast %122 : vector<128xf32> to vector<1x128xf32>
      %c0_72 = arith.constant 0 : index
      %c0_73 = arith.constant 0 : index
      %c0_74 = arith.constant 0 : index
      %c0_75 = arith.constant 0 : index
      %124 = vector.load %arg5[%c0_72, %c0_73, %c0_74, %c0_75] : memref<1x1x1x128xf32, #tpu.memory_space<vmem>>, vector<1x1x1x128xf32>
      %125 = vector.shape_cast %124 : vector<1x1x1x128xf32> to vector<1x128xf32>
      %126 = vector.shape_cast %123 : vector<1x128xf32> to vector<1x1x1x128xf32>
      tpu.vector_store %arg5[%c0_72, %c0_73, %c0_74, %c0_75], %126 {strides = array<i32>} : memref<1x1x1x128xf32, #tpu.memory_space<vmem>>, vector<1x1x1x128xf32>,
    } else {
    }
    return
  }
  func.func @transform_0(%arg0: i32, %arg1: i32, %arg2: i32) -> (i32, i32, i32, i32) {
    %c1_i32 = arith.constant 1 : i32
    %0 = arith.muli %arg1, %c1_i32 : i32
    %1 = arith.addi %0, %arg2 : i32
    %c0_i32 = arith.constant 0 : i32
    %c0_i32_0 = arith.constant 0 : i32
    %c0_i32_1 = arith.constant 0 : i32
    return %arg0, %c0_i32, %1, %c0_i32_0 : i32, i32, i32, i32
  }
  func.func @transform_1(%arg0: i32, %arg1: i32, %arg2: i32) -> (i32, i32, i32) {
    %c1_i32 = arith.constant 1 : i32
    %0 = arith.muli %arg1, %c1_i32 : i32
    %1 = arith.addi %0, %arg2 : i32
    %c0_i32 = arith.constant 0 : i32
    %c0_i32_0 = arith.constant 0 : i32
    return %arg0, %1, %c0_i32 : i32, i32, i32
  }
  func.func @transform_2(%arg0: i32, %arg1: i32, %arg2: i32) -> (i32, i32, i32, i32) {
    %c0_i32 = arith.constant 0 : i32
    %c0_i32_0 = arith.constant 0 : i32
    %c0_i32_1 = arith.constant 0 : i32
    return %arg0, %arg1, %c0_i32, %c0_i32_0 : i32, i32, i32, i32
  }
}

</mosaic_0001>

<llo_original>
// kernel: tpu_custom_call.1
$region0: #{tpu_custom_call.1}
  #allocation0 [shape = 'u32[]', space=smem, size = 0x4, offset = 0x4, fixed_abs, tag = 'smem constant byte address 0x4 - core index']
  #allocation1 [shape = 'u32[144,128]{1,0:T(1,128)}', space=vmem, size = 0x12000, scoped, tag = 'internal scratch']
  #allocation2 [shape = 'f32[2,128]{1,0:T(2,128)}', space=vmem, size = 0x400, scoped, tag = 'scratch operand']
  %s0 = inlined_call_operand.hbm [shape: f32[2,8,2,128], index: 0, kind: input, shape index: {}]
  %s1 = inlined_call_operand.hbm [shape: s32[2,2,128], index: 1, kind: input, shape index: {}]
  %s2 = inlined_call_operand.hbm [shape: f32[2,1,1,128], index: 2, kind: output, shape index: {}]
  %s3 = sld [smem:[#allocation0]]
  $region57: #{tpu_custom_call.1} parent=0
    _
  %s5 = ssub.s32 1, %s3
  %s6 = scalar_select 0, %s5, %s3
  $region1: #{tpu_custom_call.1} parent=0
    #allocation3 [shape = 'u8[16384]{0}', space=vmem, size = 0x4000, scoped, tag = 'input window, operand 0']
    #allocation4 [shape = 's32[2]{0}', space=sflag, size = 0x8, scoped, tag = 'scoped memory for tpu_custom_call.1']
    #allocation5 [shape = 's32[2]{0}', space=sflag, size = 0x8, scoped, tag = 'scoped memory for tpu_custom_call.1']
    #allocation6 [shape = 'u8[2048]{0}', space=vmem, size = 0x800, scoped, tag = 'input window, operand 1']
    #allocation7 [shape = 's32[2]{0}', space=sflag, size = 0x8, scoped, tag = 'scoped memory for tpu_custom_call.1']
    #allocation8 [shape = 'u8[1024]{0}', space=vmem, size = 0x400, scoped, tag = 'output window, operand 0']
    %7 = vsyncpa [#allocation4], 0
    %s8 = scalar_lea.sflag [#allocation4], 1
    %9 = vsyncpa %s8, 0
    %10 = vsyncpa [#allocation7], 0
    %s11 = scalar_lea.sflag [#allocation7], 1
    %12 = vsyncpa %s11, 0
    %13 = vsyncpa [#allocation5], 0
    %s14 = scalar_lea.sflag [#allocation5], 1
    %15 = vsyncpa %s14, 0
    loop: start=0, step=1, limit=4
    $region2: #{tpu_custom_call.1} parent=1 // loop_pre_header
      _
    $region3: #{tpu_custom_call.1} parent=1 // loop_header
      %s17 = sphi 0, %s21
      %p18 = scmp.ge.s32.totalorder %s17, 4
      %s24 = sphi 0, %s43
      %s25 = sphi 0, %s39
      %s26 = sphi 0, %s35
      %s27 = sphi 0, %s24
      %s28 = sphi 0, %s25
      %s29 = sphi 0, %s26
      %s30 = sphi 0, %s27
      %s31 = sphi 0, %s28
      %s32 = sphi 0, %s29
      %s50 = sphi 0, %s52
      %s53 = sphi 0, %s50
      %s54 = sphi 0, %s53
      %s70 = sphi 0, %s54
      %s80 = sphi 0, %s82
      %s83 = sphi 0, %s80
      %s84 = sphi 0, %s83
      %s100 = sphi 0, %s84
      %s108 = sphi 0, %s110
      %s111 = sphi 0, %s108
      %s112 = sphi 0, %s111
      %s128 = sphi 0, %s112
    $region4: #{tpu_custom_call.1} parent=1 // loop_header_branch
      %20 = sbr.rel (%p18) target = $region8
    $region5: #{tpu_custom_call.1} parent=1 // loop_body
      %s22 = ssub.s32 %s17, 1
      %s23 = ssub.s32 %s17, 2
      %s33 = sadd.s32 1, %s26
      %p34 = scmp.ge.s32.totalorder %s33, 1
      %s35 = scalar_select %p34, 0, %s33
      %s36 = sadd.s32 1, %s25
      %s37 = scalar_select %p34, %s36, %s25
      %p38 = scmp.ge.s32.totalorder %s37, 1
      %s39 = scalar_select %p38, 0, %s37
      %s40 = sadd.s32 1, %s24
      %s41 = scalar_select %p38, %s40, %s24
      %p42 = scmp.ge.s32.totalorder %s41, 2
      %s43 = scalar_select %p42, 0, %s41
      %s44 = sadd.s32 %s25, %s26
      %s45 = sadd.s32 %s39, %s35
      %s46 = ssub.s32 %s24, %s43
      %s47 = ssub.s32 %s44, %s45
      %s48 = sor.u32 %s46, %s47
      %p49 = scmp.eq.s32.totalorder %s48, 0
      %s51 = sadd.s32 %s50, 1
      %s52 = scalar_select %p49, %s50, %s51
      %p55 = pneg %p49
      %p56 = scmp.eq.s32.totalorder %s17, 1
      %p57 = por %p55, %p56
      %p58 = scmp.ne.s32.totalorder %s50, %s53
      %p59 = scmp.eq.s32.totalorder %s17, 0
      %p60 = por %p58, %p59
      %p61 = scmp.ne.s32.totalorder %s50, %s53
      %p62 = scmp.eq.s32.totalorder %s22, 1
      %p63 = por %p61, %p62
      %p64 = scmp.ne.s32.totalorder %s53, %s54
      %p65 = scmp.eq.s32.totalorder %s22, 0
      %p66 = por %p64, %p65
      %p67 = scmp.ne.s32.totalorder %s53, %s54
      %p68 = scmp.eq.s32.totalorder %s23, 1
      %p69 = por %p67, %p68
      %p71 = scmp.ne.s32.totalorder %s54, %s70
      %p72 = scmp.eq.s32.totalorder %s23, 0
      %p73 = por %p71, %p72
      %s74 = sadd.s32 %s25, %s26
      %s75 = sadd.s32 %s39, %s35
      %s76 = ssub.s32 %s24, %s43
      %s77 = ssub.s32 %s74, %s75
      %s78 = sor.u32 %s76, %s77
      %p79 = scmp.eq.s32.totalorder %s78, 0
      %s81 = sadd.s32 %s80, 1
      %s82 = scalar_select %p79, %s80, %s81
      %p85 = pneg %p79
      %p86 = scmp.eq.s32.totalorder %s17, 1
      %p87 = por %p85, %p86
      %p88 = scmp.ne.s32.totalorder %s80, %s83
      %p89 = scmp.eq.s32.totalorder %s17, 0
      %p90 = por %p88, %p89
      %p91 = scmp.ne.s32.totalorder %s80, %s83
      %p92 = scmp.eq.s32.totalorder %s22, 1
      %p93 = por %p91, %p92
      %p94 = scmp.ne.s32.totalorder %s83, %s84
      %p95 = scmp.eq.s32.totalorder %s22, 0
      %p96 = por %p94, %p95
      %p97 = scmp.ne.s32.totalorder %s83, %s84
      %p98 = scmp.eq.s32.totalorder %s23, 1
      %p99 = por %p97, %p98
      %p101 = scmp.ne.s32.totalorder %s84, %s100
      %p102 = scmp.eq.s32.totalorder %s23, 0
      %p103 = por %p101, %p102
      %s104 = ssub.s32 %s24, %s43
      %s105 = ssub.s32 %s25, %s39
      %s106 = sor.u32 %s104, %s105
      %p107 = scmp.eq.s32.totalorder %s106, 0
      %s109 = sadd.s32 %s108, 1
      %s110 = scalar_select %p107, %s108, %s109
      %p113 = pneg %p107
      %p114 = scmp.eq.s32.totalorder %s17, 1
      %p115 = por %p113, %p114
      %p116 = scmp.ne.s32.totalorder %s108, %s111
      %p117 = scmp.eq.s32.totalorder %s17, 0
      %p118 = por %p116, %p117
      %p119 = scmp.ne.s32.totalorder %s108, %s111
      %p120 = scmp.eq.s32.totalorder %s22, 1
      %p121 = por %p119, %p120
      %p122 = scmp.ne.s32.totalorder %s111, %s112
      %p123 = scmp.eq.s32.totalorder %s22, 0
      %p124 = por %p122, %p123
      %p125 = scmp.ne.s32.totalorder %s111, %s112
      %p126 = scmp.eq.s32.totalorder %s23, 1
      %p127 = por %p125, %p126
      %p129 = scmp.ne.s32.totalorder %s112, %s128
      %p130 = scmp.eq.s32.totalorder %s23, 0
      %p131 = por %p129, %p130
      %p132 = scmp.le.s32.totalorder 1, %s17
      %p133 = scmp.lt.s32.totalorder %s17, 3
      %p134 = pnand %p132, %p133
      %p135 = pneg %p134
      // Predicated region
      $region9: #{tpu_custom_call.1} parent=5 // pred_check
        _
      $region10: #{tpu_custom_call.1} parent=5 // pred_check_branch
        %137 = sbr.rel (%p134) target = $region12
      $region11: #{tpu_custom_call.1} parent=5 // pred_region
        %s138 = ssub.s32 %s17, 1
      $region12: #{tpu_custom_call.1} parent=5 // pred_fallthru
        _
      %p139 = scmp.lt.s32.totalorder %s17, 2
      // Predicated region
      $region13: #{tpu_custom_call.1} parent=5 // pred_check
        %p140 = pneg %p139
      $region14: #{tpu_custom_call.1} parent=5 // pred_check_branch
        %142 = sbr.rel (%p140) target = $region16
      $region15: #{tpu_custom_call.1} parent=5 // pred_region
        // Predicated region
        $region17: #{tpu_custom_call.1} parent=15 // pred_check
          %p143 = pneg %p60
        $region18: #{tpu_custom_call.1} parent=15 // pred_check_branch
          %145 = sbr.rel (%p143) target = $region20
        $region19: #{tpu_custom_call.1} parent=15 // pred_region
          %s146 = sand.u32 %s50, 1
          %s147 = scalar_lea.sflag [#allocation4], %s146
          %s148 = sand.u32 %s50, 1
          %s149 = smul.addr %s148, 16
          %s150 = scalar_lea.vmem [#allocation3], %s149
          %s151 = sadd.s32 %s25, %s26
          %s153 = ssub.s32 256, 256
          %154 = vsyncadd %s147, %s153
          %s155 = smul.addr %s24, 8
          %s156 = sadd.s32 %s151, %s155
          %s157 = smul.addr %s156, 32
          %s158 = scalar_lea.hbm %s0, %s157
          %s159 = sshll.u32 %s150, 4
          %s160 = int_to_ptr.vmem [resolvable:$true] %s159
          %165 = dma.hbm_to_vmem [thread:$0]  %s158, 256, %s160, %s147, 32, 32, 2
        $region20: #{tpu_custom_call.1} parent=15 // pred_fallthru
          _
        // Predicated region
        $region21: #{tpu_custom_call.1} parent=15 // pred_check
          %p166 = pneg %p90
        $region22: #{tpu_custom_call.1} parent=15 // pred_check_branch
          %168 = sbr.rel (%p166) target = $region24
        $region23: #{tpu_custom_call.1} parent=15 // pred_region
          %s169 = sand.u32 %s80, 1
          %s170 = scalar_lea.sflag [#allocation7], %s169
          %s171 = sand.u32 %s80, 1
          %s172 = smul.addr %s171, 2
          %s173 = scalar_lea.vmem [#allocation6], %s172
          %s174 = sadd.s32 %s25, %s26
          %s176 = ssub.s32 32, 32
          %177 = vsyncadd %s170, %s176
          %s178 = sadd.s32 %s174, %s24
          %s179 = smul.addr %s178, 32
          %s180 = scalar_lea.hbm %s1, %s179
          %s182 = sshll.u32 %s173, 4
          %s183 = int_to_ptr.vmem [resolvable:$true] %s182
          %185 = dma.hbm_to_vmem [thread:$0]  %s180, 32, %s183, %s170
        $region24: #{tpu_custom_call.1} parent=15 // pred_fallthru
          _
      $region16: #{tpu_custom_call.1} parent=5 // pred_fallthru
        _
      %p186 = scmp.le.s32.totalorder 1, %s17
      %p187 = scmp.lt.s32.totalorder %s17, 3
      %p188 = pnand %p186, %p187
      %p189 = pneg %p188
      // Predicated region
      $region25: #{tpu_custom_call.1} parent=5 // pred_check
        _
      $region26: #{tpu_custom_call.1} parent=5 // pred_check_branch
        %191 = sbr.rel (%p188) target = $region28
      $region27: #{tpu_custom_call.1} parent=5 // pred_region
        %s192 = ssub.s32 %s17, 1
        %s193 = sand.u32 %s53, 1
        %s194 = scalar_lea.sflag [#allocation4], %s193
        %s195 = sand.u32 %s53, 1
        %s196 = smul.addr %s195, 16
        %s197 = scalar_lea.vmem [#allocation3], %s196
        // Predicated region
        $region29: #{tpu_custom_call.1} parent=27 // pred_check
          %p198 = pneg %p66
        $region30: #{tpu_custom_call.1} parent=27 // pred_check_branch
          %200 = sbr.rel (%p198) target = $region32
        $region31: #{tpu_custom_call.1} parent=27 // pred_region
          %201 = dma.done %s194, 256
        $region32: #{tpu_custom_call.1} parent=27 // pred_fallthru
          _
        %s202 = sand.u32 %s83, 1
        %s203 = scalar_lea.sflag [#allocation7], %s202
        %s204 = sand.u32 %s83, 1
        %s205 = smul.addr %s204, 2
        %s206 = scalar_lea.vmem [#allocation6], %s205
        // Predicated region
        $region33: #{tpu_custom_call.1} parent=27 // pred_check
          %p207 = pneg %p96
        $region34: #{tpu_custom_call.1} parent=27 // pred_check_branch
          %209 = sbr.rel (%p207) target = $region36
        $region35: #{tpu_custom_call.1} parent=27 // pred_region
          %210 = dma.done %s203, 32
        $region36: #{tpu_custom_call.1} parent=27 // pred_fallthru
          _
        %s211 = sand.u32 %s53, 1
        %s212 = scalar_lea.sflag [#allocation4], %s211
        %s213 = sand.u32 %s53, 1
        %s214 = smul.addr %s213, 16
        %s215 = scalar_lea.vmem [#allocation3], %s214
        %p216 = pneg %p66
        %p217 = pneg %p63
        %s218 = sand.u32 %s83, 1
        %s219 = scalar_lea.sflag [#allocation7], %s218
        %s220 = sand.u32 %s83, 1
        %s221 = smul.addr %s220, 2
        %s222 = scalar_lea.vmem [#allocation6], %s221
        %p223 = pneg %p96
        %p224 = pneg %p93
        %p225 = pneg %p124
        %p226 = pneg %p121
        %s227 = sand.u32 %s111, 1
        %s228 = scalar_lea.sflag [#allocation5], %s227
        %s229 = sand.u32 %s111, 1
        %s230 = scalar_lea.vmem [#allocation8], %s229
        %s231 = sadd.s32 %s28, %s29
        %s232 = sadd.s32 %s28, %s29
        %p233 = scmp.eq.s32.totalorder %s29, 0
        // Predicated region
        $region37: #{tpu_custom_call.1} parent=27 // pred_check
          %p234 = pneg %p233
        $region38: #{tpu_custom_call.1} parent=27 // pred_check_branch
          %236 = sbr.rel (%p234) target = $region40
        $region39: #{tpu_custom_call.1} parent=27 // pred_region
          %237 = vst [vmem:[#allocation2] sm:$0x3] 0.0
        $region40: #{tpu_custom_call.1} parent=27 // pred_fallthru
          _
        %v238 = vld [vmem:[%s206] sm:$0x3]
        %v239 = vld [vmem:[%s197] sm:$0x3]
        %vm240 = vcmp.eq.s32.totalorder %v238, 0
        %v241 = vsel %vm240, %v239, 0.0
        %s242 = scalar_lea.vmem %s197, 2 [#allocation3]
        %v243 = vld [vmem:[%s242] sm:$0x3]
        %v244 = vmax.f32 %v239, %v243
        %vm245 = vcmp.eq.s32.totalorder %v238, 1
        %v246 = vsel %vm245, %v243, %v241
        %s247 = scalar_lea.vmem %s197, 4 [#allocation3]
        %v248 = vld [vmem:[%s247] sm:$0x3]
        %v249 = vmax.f32 %v244, %v248
        %vm250 = vcmp.eq.s32.totalorder %v238, 2
        %v251 = vsel %vm250, %v248, %v246
        %s252 = scalar_lea.vmem %s197, 6 [#allocation3]
        %v253 = vld [vmem:[%s252] sm:$0x3]
        %v254 = vmax.f32 %v249, %v253
        %vm255 = vcmp.eq.s32.totalorder %v238, 3
        %v256 = vsel %vm255, %v253, %v251
        %s257 = scalar_lea.vmem %s197, 8 [#allocation3]
        %v258 = vld [vmem:[%s257] sm:$0x3]
        %v259 = vmax.f32 %v254, %v258
        %vm260 = vcmp.eq.s32.totalorder %v238, 4
        %v261 = vsel %vm260, %v258, %v256
        %s262 = scalar_lea.vmem %s197, 10 [#allocation3]
        %v263 = vld [vmem:[%s262] sm:$0x3]
        %v264 = vmax.f32 %v259, %v263
        %vm265 = vcmp.eq.s32.totalorder %v238, 5
        %v266 = vsel %vm265, %v263, %v261
        %s267 = scalar_lea.vmem %s197, 12 [#allocation3]
        %v268 = vld [vmem:[%s267] sm:$0x3]
        %v269 = vmax.f32 %v264, %v268
        %vm270 = vcmp.eq.s32.totalorder %v238, 6
        %v271 = vsel %vm270, %v268, %v266
        %s272 = scalar_lea.vmem %s197, 14 [#allocation3]
        %v273 = vld [vmem:[%s272] sm:$0x3]
        %v274 = vmax.f32 %v269, %v273
        %vm275 = vcmp.eq.s32.totalorder %v238, 7
        %v276 = vsel %vm275, %v273, %v271
        %v277 = vsub.f32 %v239, %v274
        %v278 = vmul.f32 %v277, 1.442695
        %v279 = vpow.pop %v278
        %v280 = vadd.f32 %v279, 0.0
        %v281 = vsub.f32 %v243, %v274
        %v282 = vmul.f32 %v281, 1.442695
        %v283 = vpow.pop %v282
        %v284 = vadd.f32 %v280, %v283
        %v285 = vsub.f32 %v248, %v274
        %v286 = vmul.f32 %v285, 1.442695
        %v287 = vpow.pop %v286
        %v288 = vadd.f32 %v284, %v287
        %v289 = vsub.f32 %v253, %v274
        %v290 = vmul.f32 %v289, 1.442695
        %v291 = vpow.pop %v290
        %v292 = vadd.f32 %v288, %v291
        %v293 = vsub.f32 %v258, %v274
        %v294 = vmul.f32 %v293, 1.442695
        %v295 = vpow.pop %v294
        %v296 = vadd.f32 %v292, %v295
        %v297 = vsub.f32 %v263, %v274
        %v298 = vmul.f32 %v297, 1.442695
        %v299 = vpow.pop %v298
        %v300 = vadd.f32 %v296, %v299
        %v301 = vsub.f32 %v268, %v274
        %v302 = vmul.f32 %v301, 1.442695
        %v303 = vpow.pop %v302
        %v304 = vadd.f32 %v300, %v303
        %v305 = vsub.f32 %v273, %v274
        %v306 = vmul.f32 %v305, 1.442695
        %v307 = vpow.pop %v306
        %v308 = vadd.f32 %v304, %v307
        %v309 = vlog2.pop %v308
        %v310 = vmul.f32 %v309, 0.6931472
        %v311 = vadd.f32 %v310, %v274
        %v312 = vsub.f32 %v311, %v276
        %v313 = vld [vmem:[#allocation2] sm:$0x3]
        %v314 = vadd.f32 %v313, %v312
        %315 = vst [vmem:[#allocation2] sm:$0x3] %v314
        // Predicated region
        $region41: #{tpu_custom_call.1} parent=27 // pred_check
          %p316 = pneg %p233
        $region42: #{tpu_custom_call.1} parent=27 // pred_check_branch
          %318 = sbr.rel (%p316) target = $region44
        $region43: #{tpu_custom_call.1} parent=27 // pred_region
          %v319 = vld [vmem:[#allocation2] sm:$0x3]
          %vm320 = vcmask 1041408
          %v321 = vsel %vm320, %v319, 0.0
          %v322 = vrot.slane %v321, 4
          %v323 = vadd.f32 %v321, %v322
          %v324 = vrot.slane %v323, 2
          %v325 = vadd.f32 %v323, %v324
          %v326 = vrot.slane %v325, 1
          %v327 = vadd.f32 %v325, %v326
          %328 = vst [vmem:[%s230] sm:$0x1] %v327
        $region44: #{tpu_custom_call.1} parent=27 // pred_fallthru
          _
        %s329 = sand.u32 %s111, 1
        %s330 = scalar_lea.sflag [#allocation5], %s329
        %s331 = sand.u32 %s111, 1
        %s332 = scalar_lea.vmem [#allocation8], %s331
        // Predicated region
        $region45: #{tpu_custom_call.1} parent=27 // pred_check
          %p333 = pneg %p121
        $region46: #{tpu_custom_call.1} parent=27 // pred_check_branch
          %335 = sbr.rel (%p333) target = $region48
        $region47: #{tpu_custom_call.1} parent=27 // pred_region
          %s337 = ssub.s32 16, 16
          %338 = vsyncadd %s330, %s337
          %s339 = sadd.s32 %s28, %s27
          %s340 = smul.addr %s339, 16
          %s341 = scalar_lea.hbm %s2, %s340
          %s343 = sshll.u32 %s332, 4
          %s344 = int_to_ptr.vmem [resolvable:$true] %s343
          %346 = dma.vmem_to_hbm [thread:$0]  %s344, 16, %s341, %s330
        $region48: #{tpu_custom_call.1} parent=27 // pred_fallthru
          _
      $region28: #{tpu_custom_call.1} parent=5 // pred_fallthru
        _
      %p347 = scmp.le.s32.totalorder 2, %s17
      // Predicated region
      $region49: #{tpu_custom_call.1} parent=5 // pred_check
        %p348 = pneg %p347
      $region50: #{tpu_custom_call.1} parent=5 // pred_check_branch
        %350 = sbr.rel (%p348) target = $region52
      $region51: #{tpu_custom_call.1} parent=5 // pred_region
        %s351 = ssub.s32 %s17, 2
        // Predicated region
        $region53: #{tpu_custom_call.1} parent=51 // pred_check
          %p352 = pneg %p127
        $region54: #{tpu_custom_call.1} parent=51 // pred_check_branch
          %354 = sbr.rel (%p352) target = $region56
        $region55: #{tpu_custom_call.1} parent=51 // pred_region
          %s355 = sand.u32 %s112, 1
          %s356 = scalar_lea.sflag [#allocation5], %s355
          %s357 = sand.u32 %s112, 1
          %s358 = scalar_lea.vmem [#allocation8], %s357
          %359 = dma.done %s356, 16
        $region56: #{tpu_custom_call.1} parent=51 // pred_fallthru
          _
      $region52: #{tpu_custom_call.1} parent=5 // pred_fallthru
        _
    $region6: #{tpu_custom_call.1} parent=1 // loop_footer
      %s21 = sadd.s32 1, %s17
    $region7: #{tpu_custom_call.1} parent=1 // loop_footer_branch
      %16 = sbr.rel target = $region3
    $region8: #{tpu_custom_call.1} parent=1 // loop_exit
      _
    %360 = vsyncpa [#allocation4], 1
    %s361 = scalar_lea.sflag [#allocation4], 1
    %362 = vsyncpa %s361, 1
    %363 = vsyncpa [#allocation7], 1
    %s364 = scalar_lea.sflag [#allocation7], 1
    %365 = vsyncpa %s364, 1
    %366 = vsyncpa [#allocation5], 1
    %s367 = scalar_lea.sflag [#allocation5], 1
    %368 = vsyncpa %s367, 1

</llo_original>
